<compile_context>
chip_gen: v7x
topology: tpu7x:2x2x1
jax: 0.10.0
libtpu: 0.0.40
codegen_flags: <defaults>
</compile_context>

<pallas_src>
import functools

import jax
import jax.numpy as jnp
from jax.experimental import pallas as pl
from jax.experimental.pallas import tpu as pltpu


# ---------------------------------------------------------------------------
# XLU roll feature probe (cached per backend).
# ---------------------------------------------------------------------------
@functools.lru_cache(maxsize=None)
def _xlu_roll_support(backend: str) -> tuple:
    """Returns (f32 lane+sublane rolls OK, bf16 lane rolls OK)."""
    if backend != "tpu":
        return (False, False)

    def probe(dtype, rolls):
        try:
            def kern(x_ref, o_ref):
                v = x_ref[...]
                for ax, sh in rolls:
                    v = pltpu.roll(v, sh, axis=ax)
                o_ref[...] = v

            x = (jnp.arange(2 * 16 * 128, dtype=jnp.float32)
                 .reshape(2, 16, 128) / 7.0).astype(dtype)
            got = pl.pallas_call(
                kern, out_shape=jax.ShapeDtypeStruct(x.shape, x.dtype))(x)
            want = x
            for ax, sh in rolls:
                want = jnp.roll(want, sh, axis=ax)
            return bool(jnp.array_equal(got, want))
        except Exception:
            return False

    f32_ok = probe(jnp.float32, ((1, 3), (2, 5)))
    bf16_lane_ok = probe(jnp.bfloat16, ((2, 5),))
    return (f32_ok, bf16_lane_ok)


# ---------------------------------------------------------------------------
# Kernel: one circular shift per residue slab (r = 0..3); r = 4 never streamed.
# ---------------------------------------------------------------------------
def _pixel_mixer_kernel(x_ref, o_ref, *, mix_margin: int,
                        xlu_lane: bool, xlu_sub: bool):
    # x_ref / o_ref: (bg, 4, H, W); dim 1 is the channel residue r = c % 5.
    _, _, H, W = x_ref.shape
    m = mix_margin

    def shift_w(r, shift):
        s = shift % W                     # jnp.roll semantics: out[i]=x[i-s]
        if xlu_lane:
            o_ref[:, r] = pltpu.roll(x_ref[:, r], s, axis=2)
        else:                             # two-piece direct copy, no temporary
            o_ref[:, r, :, s:] = x_ref[:, r, :, :W - s]
            o_ref[:, r, :, :s] = x_ref[:, r, :, W - s:]

    def shift_h(r, shift):
        s = shift % H
        if xlu_sub:
            o_ref[:, r] = pltpu.roll(x_ref[:, r], s, axis=1)
        else:
            o_ref[:, r, s:, :] = x_ref[:, r, :H - s, :]
            o_ref[:, r, :s, :] = x_ref[:, r, H - s:, :]

    shift_w(0, -m)   # c%5==0: mask[m, -1] -> x[h, (w+m)%W]
    shift_w(1, +m)   # c%5==1: mask[m,  0] -> x[h, (w-m)%W]
    shift_h(2, -m)   # c%5==2: mask[-1, m] -> x[(h+m)%H, w]
    shift_h(3, +m)   # c%5==3: mask[ 0, m] -> x[(h-m)%H, w]
    # r == 4 (identity) is intentionally untouched: it lives only in the
    # aliased input/output HBM buffer and never moves through VMEM.


# ---------------------------------------------------------------------------
# VMEM / block budgets (generation-aware).
# ---------------------------------------------------------------------------
def _vmem_and_block_budget():
    try:
        cap = int(pltpu.get_tpu_info().vmem_capacity_bytes)
    except Exception:
        cap = 64 * 1024 * 1024            # conservative (v7x per-TC size)
    vmem_limit = int(min(cap * 3 // 4, 64 * 1024 * 1024))   # 64MiB v5e/v6e, 48MiB v7x
    target_block = int(min(4 * 1024 * 1024, vmem_limit // 6))
    return vmem_limit, target_block


# ---------------------------------------------------------------------------
# pallas_call wrapper.
# ---------------------------------------------------------------------------
@functools.partial(
    jax.jit,
    static_argnames=("mix_margin", "bg", "vmem_limit", "xlu_lane", "xlu_sub"),
    donate_argnums=(0,),
)
def _pixel_mixer_impl(x, *, mix_margin, bg, vmem_limit, xlu_lane, xlu_sub):
    N, C, H, W = x.shape
    G = C // 5
    NG = N * G
    xg = x.reshape(NG, 5, H, W)           # free, contiguous reshape

    kernel = functools.partial(_pixel_mixer_kernel, mix_margin=mix_margin,
                               xlu_lane=xlu_lane, xlu_sub=xlu_sub)
    # Residue axis blocked to 4 (block index pinned to 0): r = 0..3 only.
    block = (bg, 4, H, W)
    index_map = lambda i: (i, 0, 0, 0)

    out = pl.pallas_call(
        kernel,
        out_shape=jax.ShapeDtypeStruct((NG, 5, H, W), x.dtype),
        grid_spec=pltpu.PrefetchScalarGridSpec(
            num_scalar_prefetch=0,
            grid=(pl.cdiv(NG, bg),),
            in_specs=[pl.BlockSpec(block, index_map)],
            out_specs=pl.BlockSpec(block, index_map),
        ),
        # Output aliases the (donated) input, so the never-written r == 4
        # planes keep their original values with zero extra HBM traffic.
        input_output_aliases={0: 0},
        compiler_params=pltpu.CompilerParams(
            dimension_semantics=("parallel",),
            vmem_limit_bytes=vmem_limit,
        ),
    )(xg)
    return out.reshape(N, C, H, W)


def pixel_mixer_pallas(x: jax.Array, mix_margin: int = 1, *,
                       group_block=None, use_xlu_roll=None) -> jax.Array:
    """PixelMixer forward (NCHW), matching the PyTorch module.

    NOTE: `x` is DONATED (the result aliases the input buffer so identity
    channels, c % 5 == 4, are never re-streamed through HBM).  Do not reuse
    `x` after this call.
    """
    if x.ndim != 4:
        raise ValueError("expected NCHW input")
    N, C, H, W = x.shape
    if C % 5 != 0:
        raise ValueError(f"planes (C={C}) must be a multiple of 5")
    m = int(mix_margin)
    if not (1 <= m < min(H, W)):
        raise ValueError("mix_margin must satisfy 1 <= mix_margin < min(H, W)")

    itemsize = x.dtype.itemsize
    NG = N * (C // 5)
    vmem_limit, target_block = _vmem_and_block_budget()
    per_group = 4 * H * W * itemsize      # bytes streamed per group (r=0..3)

    if group_block is None:
        bg = max(1, min(NG, target_block // per_group))
        if NG >= 2:                       # keep >= 2 grid steps (v7x: 2 TCs)
            bg = min(bg, -(-NG // 2))
    else:
        bg = int(group_block)
        if not (1 <= bg <= NG):
            raise ValueError("group_block must be in [1, N * C // 5]")
        if 5 * bg * per_group > vmem_limit:
            raise ValueError(
                f"group_block={bg} exceeds the VMEM budget "
                f"({5 * bg * per_group} > {vmem_limit} bytes)")

    if use_xlu_roll is None:
        f32_ok, bf16_lane_ok = _xlu_roll_support(jax.default_backend())
    elif use_xlu_roll:
        f32_ok, bf16_lane_ok = True, True
    else:
        f32_ok, bf16_lane_ok = False, False

    if itemsize == 4:
        subpack, lane_ok, sub_ok = 8, f32_ok, f32_ok
    elif x.dtype == jnp.bfloat16:
        subpack, lane_ok, sub_ok = 16, bf16_lane_ok, False
    else:
        subpack, lane_ok, sub_ok = None, False, False
    aligned = subpack is not None and H % subpack == 0 and W % 128 == 0
    xlu_lane = bool(aligned and lane_ok)
    xlu_sub = bool(aligned and sub_ok)

    return _pixel_mixer_impl(x, mix_margin=m, bg=bg, vmem_limit=vmem_limit,
                             xlu_lane=xlu_lane, xlu_sub=xlu_sub)


# ---------------------------------------------------------------------------
# Pure-JAX reference identical to the PyTorch module (for correctness checks).
# ---------------------------------------------------------------------------
def _build_mask(planes: int, mix_margin: int) -> jax.Array:
    m = mix_margin
    k = 2 * m + 1
    mask = jnp.zeros((planes, 1, k, k), dtype=jnp.float32)
    mask = mask.at[3::5, 0, 0, m].set(1.0)
    mask = mask.at[2::5, 0, -1, m].set(1.0)
    mask = mask.at[1::5, 0, m, 0].set(1.0)
    mask = mask.at[0::5, 0, m, -1].set(1.0)
    mask = mask.at[4::5, 0, m, m].set(1.0)
    return mask


def _pixel_mixer_ref(x: jax.Array, mix_margin: int = 1) -> jax.Array:
    m = mix_margin
    C = x.shape[1]
    mask = _build_mask(C, m).astype(x.dtype)
    xp = jnp.pad(x, ((0, 0), (0, 0), (m, m), (m, m)), mode="wrap")
    return jax.lax.conv_general_dilated(
        xp, mask, window_strides=(1, 1), padding="VALID",
        dimension_numbers=("NCHW", "OIHW", "NCHW"), feature_group_count=C)


if __name__ == "__main__":
    root = jax.random.PRNGKey(0)
    k1, k2, k3, k4 = jax.random.split(root, 4)
    # References are computed BEFORE the kernel calls because the kernel
    # donates its input buffer.

    # 1) Lane-dense f32 (W % 128 == 0): XLU pltpu.roll fast path.
    x1 = jax.random.normal(k1, (2, 10, 16, 128), dtype=jnp.float32)
    ref1 = _pixel_mixer_ref(x1, 1)
    out1 = jax.block_until_ready(pixel_mixer_pallas(x1, mix_margin=1))
    assert out1.shape == ref1.shape and out1.dtype == ref1.dtype
    assert jnp.allclose(out1, ref1, atol=1e-5, rtol=1e-5)

    # 2) Small unaligned spatial dims (typical 16x16 map): two-piece copy path.
    x2 = jax.random.normal(k2, (2, 10, 16, 16), dtype=jnp.float32)
    ref2 = _pixel_mixer_ref(x2, 1)
    out2 = jax.block_until_ready(pixel_mixer_pallas(x2, mix_margin=1))
    assert jnp.allclose(out2, ref2, atol=1e-5, rtol=1e-5)

    # 3) Larger spatial dims, mix_margin=2, explicit channel-group tiling.
    x3 = jax.random.normal(k3, (1, 20, 32, 256), dtype=jnp.float32)
    ref3 = _pixel_mixer_ref(x3, 2)
    out3 = jax.block_until_ready(
        pixel_mixer_pallas(x3, mix_margin=2, group_block=2))
    assert jnp.allclose(out3, ref3, atol=1e-5, rtol=1e-5)

    # 4) bfloat16 (pure data movement): lane-aligned bf16 path.
    x4 = jax.random.normal(k4, (1, 5, 16, 128), dtype=jnp.bfloat16)
    ref4 = _pixel_mixer_ref(x4.astype(jnp.float32), 1).astype(jnp.bfloat16)
    out4 = jax.block_until_ready(pixel_mixer_pallas(x4, mix_margin=1))
    assert out4.dtype == jnp.bfloat16
    assert jnp.allclose(out4.astype(jnp.float32), ref4.astype(jnp.float32),
                        atol=1e-2, rtol=1e-2)

    print("KERNEL_OK")
</pallas_src>

<mosaic_0001>
module attributes {stable_mosaic.version = 11 : i64} {
  func.func @_pixel_mixer_kernel(%arg0: i32, %arg1: memref<2x4x16x128xf32, #tpu.memory_space<vmem>>, %arg2: memref<2x4x16x128xf32, #tpu.memory_space<vmem>>) attributes {dimension_semantics = [#tpu.dimension_semantics<parallel>], iteration_bounds = array<i64: 2>, scalar_prefetch = 0 : i64, scratch_operands = 0 : i64, tpu.core_type = #tpu.core_type<tc>, window_params = [{transform_indices = @transform_0, window_bounds = array<i64: 2, 4, 16, 128>}, {transform_indices = @transform_1, window_bounds = array<i64: 2, 4, 16, 128>}]} {
    %c0 = arith.constant 0 : index
    %c0_0 = arith.constant 0 : index
    %c0_1 = arith.constant 0 : index
    %c0_2 = arith.constant 0 : index
    %0 = vector.load %arg1[%c0, %c0_0, %c0_1, %c0_2] : memref<2x4x16x128xf32, #tpu.memory_space<vmem>>, vector<2x1x16x1xf32>
    %1 = vector.shape_cast %0 : vector<2x1x16x1xf32> to vector<2x16x1xf32>
    %c0_3 = arith.constant 0 : index
    %c0_4 = arith.constant 0 : index
    %c0_5 = arith.constant 0 : index
    %c127 = arith.constant 127 : index
    %2 = vector.load %arg2[%c0_3, %c0_4, %c0_5, %c127] : memref<2x4x16x128xf32, #tpu.memory_space<vmem>>, vector<2x1x16x1xf32>
    %3 = vector.shape_cast %2 : vector<2x1x16x1xf32> to vector<2x16x1xf32>
    %4 = vector.shape_cast %1 : vector<2x16x1xf32> to vector<2x1x16x1xf32>
    tpu.vector_store %arg2[%c0_3, %c0_4, %c0_5, %c127], %4 {strides = array<i32>} : memref<2x4x16x128xf32, #tpu.memory_space<vmem>>, vector<2x1x16x1xf32>,
    %c0_6 = arith.constant 0 : index
    %c0_7 = arith.constant 0 : index
    %c0_8 = arith.constant 0 : index
    %c1 = arith.constant 1 : index
    %5 = vector.load %arg1[%c0_6, %c0_7, %c0_8, %c1] : memref<2x4x16x128xf32, #tpu.memory_space<vmem>>, vector<2x1x16x127xf32>
    %6 = vector.shape_cast %5 : vector<2x1x16x127xf32> to vector<2x16x127xf32>
    %c0_9 = arith.constant 0 : index
    %c0_10 = arith.constant 0 : index
    %c0_11 = arith.constant 0 : index
    %c0_12 = arith.constant 0 : index
    %7 = vector.load %arg2[%c0_9, %c0_10, %c0_11, %c0_12] : memref<2x4x16x128xf32, #tpu.memory_space<vmem>>, vector<2x1x16x127xf32>
    %8 = vector.shape_cast %7 : vector<2x1x16x127xf32> to vector<2x16x127xf32>
    %9 = vector.shape_cast %6 : vector<2x16x127xf32> to vector<2x1x16x127xf32>
    tpu.vector_store %arg2[%c0_9, %c0_10, %c0_11, %c0_12], %9 {strides = array<i32>} : memref<2x4x16x128xf32, #tpu.memory_space<vmem>>, vector<2x1x16x127xf32>,
    %c0_13 = arith.constant 0 : index
    %c1_14 = arith.constant 1 : index
    %c0_15 = arith.constant 0 : index
    %c0_16 = arith.constant 0 : index
    %10 = vector.load %arg1[%c0_13, %c1_14, %c0_15, %c0_16] : memref<2x4x16x128xf32, #tpu.memory_space<vmem>>, vector<2x1x16x127xf32>
    %11 = vector.shape_cast %10 : vector<2x1x16x127xf32> to vector<2x16x127xf32>
    %c0_17 = arith.constant 0 : index
    %c1_18 = arith.constant 1 : index
    %c0_19 = arith.constant 0 : index
    %c1_20 = arith.constant 1 : index
    %12 = vector.load %arg2[%c0_17, %c1_18, %c0_19, %c1_20] : memref<2x4x16x128xf32, #tpu.memory_space<vmem>>, vector<2x1x16x127xf32>
    %13 = vector.shape_cast %12 : vector<2x1x16x127xf32> to vector<2x16x127xf32>
    %14 = vector.shape_cast %11 : vector<2x16x127xf32> to vector<2x1x16x127xf32>
    tpu.vector_store %arg2[%c0_17, %c1_18, %c0_19, %c1_20], %14 {strides = array<i32>} : memref<2x4x16x128xf32, #tpu.memory_space<vmem>>, vector<2x1x16x127xf32>,
    %c0_21 = arith.constant 0 : index
    %c1_22 = arith.constant 1 : index
    %c0_23 = arith.constant 0 : index
    %c127_24 = arith.constant 127 : index
    %15 = vector.load %arg1[%c0_21, %c1_22, %c0_23, %c127_24] : memref<2x4x16x128xf32, #tpu.memory_space<vmem>>, vector<2x1x16x1xf32>
    %16 = vector.shape_cast %15 : vector<2x1x16x1xf32> to vector<2x16x1xf32>
    %c0_25 = arith.constant 0 : index
    %c1_26 = arith.constant 1 : index
    %c0_27 = arith.constant 0 : index
    %c0_28 = arith.constant 0 : index
    %17 = vector.load %arg2[%c0_25, %c1_26, %c0_27, %c0_28] : memref<2x4x16x128xf32, #tpu.memory_space<vmem>>, vector<2x1x16x1xf32>
    %18 = vector.shape_cast %17 : vector<2x1x16x1xf32> to vector<2x16x1xf32>
    %19 = vector.shape_cast %16 : vector<2x16x1xf32> to vector<2x1x16x1xf32>
    tpu.vector_store %arg2[%c0_25, %c1_26, %c0_27, %c0_28], %19 {strides = array<i32>} : memref<2x4x16x128xf32, #tpu.memory_space<vmem>>, vector<2x1x16x1xf32>,
    %c0_29 = arith.constant 0 : index
    %c2 = arith.constant 2 : index
    %c0_30 = arith.constant 0 : index
    %c0_31 = arith.constant 0 : index
    %20 = vector.load %arg1[%c0_29, %c2, %c0_30, %c0_31] : memref<2x4x16x128xf32, #tpu.memory_space<vmem>>, vector<2x1x1x128xf32>
    %21 = vector.shape_cast %20 : vector<2x1x1x128xf32> to vector<2x1x128xf32>
    %c0_32 = arith.constant 0 : index
    %c2_33 = arith.constant 2 : index
    %c15 = arith.constant 15 : index
    %c0_34 = arith.constant 0 : index
    %22 = vector.load %arg2[%c0_32, %c2_33, %c15, %c0_34] : memref<2x4x16x128xf32, #tpu.memory_space<vmem>>, vector<2x1x1x128xf32>
    %23 = vector.shape_cast %22 : vector<2x1x1x128xf32> to vector<2x1x128xf32>
    %24 = vector.shape_cast %21 : vector<2x1x128xf32> to vector<2x1x1x128xf32>
    tpu.vector_store %arg2[%c0_32, %c2_33, %c15, %c0_34], %24 {strides = array<i32>} : memref<2x4x16x128xf32, #tpu.memory_space<vmem>>, vector<2x1x1x128xf32>,
    %c0_35 = arith.constant 0 : index
    %c2_36 = arith.constant 2 : index
    %c1_37 = arith.constant 1 : index
    %c0_38 = arith.constant 0 : index
    %25 = vector.load %arg1[%c0_35, %c2_36, %c1_37, %c0_38] : memref<2x4x16x128xf32, #tpu.memory_space<vmem>>, vector<2x1x15x128xf32>
    %26 = vector.shape_cast %25 : vector<2x1x15x128xf32> to vector<2x15x128xf32>
    %c0_39 = arith.constant 0 : index
    %c2_40 = arith.constant 2 : index
    %c0_41 = arith.constant 0 : index
    %c0_42 = arith.constant 0 : index
    %27 = vector.load %arg2[%c0_39, %c2_40, %c0_41, %c0_42] : memref<2x4x16x128xf32, #tpu.memory_space<vmem>>, vector<2x1x15x128xf32>
    %28 = vector.shape_cast %27 : vector<2x1x15x128xf32> to vector<2x15x128xf32>
    %29 = vector.shape_cast %26 : vector<2x15x128xf32> to vector<2x1x15x128xf32>
    tpu.vector_store %arg2[%c0_39, %c2_40, %c0_41, %c0_42], %29 {strides = array<i32>} : memref<2x4x16x128xf32, #tpu.memory_space<vmem>>, vector<2x1x15x128xf32>,
    %c0_43 = arith.constant 0 : index
    %c3 = arith.constant 3 : index
    %c0_44 = arith.constant 0 : index
    %c0_45 = arith.constant 0 : index
    %30 = vector.load %arg1[%c0_43, %c3, %c0_44, %c0_45] : memref<2x4x16x128xf32, #tpu.memory_space<vmem>>, vector<2x1x15x128xf32>
    %31 = vector.shape_cast %30 : vector<2x1x15x128xf32> to vector<2x15x128xf32>
    %c0_46 = arith.constant 0 : index
    %c3_47 = arith.constant 3 : index
    %c1_48 = arith.constant 1 : index
    %c0_49 = arith.constant 0 : index
    %32 = vector.load %arg2[%c0_46, %c3_47, %c1_48, %c0_49] : memref<2x4x16x128xf32, #tpu.memory_space<vmem>>, vector<2x1x15x128xf32>
    %33 = vector.shape_cast %32 : vector<2x1x15x128xf32> to vector<2x15x128xf32>
    %34 = vector.shape_cast %31 : vector<2x15x128xf32> to vector<2x1x15x128xf32>
    tpu.vector_store %arg2[%c0_46, %c3_47, %c1_48, %c0_49], %34 {strides = array<i32>} : memref<2x4x16x128xf32, #tpu.memory_space<vmem>>, vector<2x1x15x128xf32>,
    %c0_50 = arith.constant 0 : index
    %c3_51 = arith.constant 3 : index
    %c15_52 = arith.constant 15 : index
    %c0_53 = arith.constant 0 : index
    %35 = vector.load %arg1[%c0_50, %c3_51, %c15_52, %c0_53] : memref<2x4x16x128xf32, #tpu.memory_space<vmem>>, vector<2x1x1x128xf32>
    %36 = vector.shape_cast %35 : vector<2x1x1x128xf32> to vector<2x1x128xf32>
    %c0_54 = arith.constant 0 : index
    %c3_55 = arith.constant 3 : index
    %c0_56 = arith.constant 0 : index
    %c0_57 = arith.constant 0 : index
    %37 = vector.load %arg2[%c0_54, %c3_55, %c0_56, %c0_57] : memref<2x4x16x128xf32, #tpu.memory_space<vmem>>, vector<2x1x1x128xf32>
    %38 = vector.shape_cast %37 : vector<2x1x1x128xf32> to vector<2x1x128xf32>
    %39 = vector.shape_cast %36 : vector<2x1x128xf32> to vector<2x1x1x128xf32>
    tpu.vector_store %arg2[%c0_54, %c3_55, %c0_56, %c0_57], %39 {strides = array<i32>} : memref<2x4x16x128xf32, #tpu.memory_space<vmem>>, vector<2x1x1x128xf32>,
    return
  }
  func.func @transform_0(%arg0: i32) -> (i32, i32, i32, i32) {
    %c0_i32 = arith.constant 0 : i32
    %c0_i32_0 = arith.constant 0 : i32
    %c0_i32_1 = arith.constant 0 : i32
    %c0_i32_2 = arith.constant 0 : i32
    return %arg0, %c0_i32, %c0_i32_0, %c0_i32_1 : i32, i32, i32, i32
  }
  func.func @transform_1(%arg0: i32) -> (i32, i32, i32, i32) {
    %c0_i32 = arith.constant 0 : i32
    %c0_i32_0 = arith.constant 0 : i32
    %c0_i32_1 = arith.constant 0 : i32
    %c0_i32_2 = arith.constant 0 : i32
    return %arg0, %c0_i32, %c0_i32_0, %c0_i32_1 : i32, i32, i32, i32
  }
}

</mosaic_0001>

<llo_original>
// kernel: _pixel_mixer_impl.1
$region0: #{_pixel_mixer_impl.1}
  #allocation0 [shape = 'u32[]', space=smem, size = 0x4, offset = 0x4, fixed_abs, tag = 'smem constant byte address 0x4 - core index']
  #allocation1 [shape = 'u32[144,128]{1,0:T(1,128)}', space=vmem, size = 0x12000, scoped, tag = 'internal scratch']
  #allocation6 [shape = 's32[]', space=sflag, size = 0x4, offset = 0, fixed_abs, tag = 'sflag constant byte address 0x0 - dummy sync flag']
  #allocation8 [shape = 's32[]', space=sflag, size = 0x4, offset = 0, fixed_abs, tag = 'sflag constant byte address 0x0 - dummy sync flag']
  %s0 = inlined_call_operand.hbm [shape: f32[4,5,16,128], index: 0, kind: input, shape index: {}, may-alias: {0,1}]
  %s1 = inlined_call_operand.hbm [shape: f32[4,5,16,128], index: 1, kind: output, shape index: {}, may-alias: {0,1}]
  %s2 = sld [smem:[#allocation0]]
  $region41: #{_pixel_mixer_impl.1} parent=0
    _
  %s4 = ssub.s32 1, %s2
  %s5 = scalar_select 0, %s4, %s2
  $region1: #{_pixel_mixer_impl.1} parent=0
    #allocation2 [shape = 'u8[131072]{0}', space=vmem, size = 0x20000, scoped, tag = 'input window, operand 0']
    #allocation3 [shape = 's32[2]{0}', space=sflag, size = 0x8, scoped, tag = 'scoped memory for _pixel_mixer_impl.1']
    #allocation4 [shape = 's32[2]{0}', space=sflag, size = 0x8, scoped, tag = 'scoped memory for _pixel_mixer_impl.1']
    #allocation5 [shape = 'u8[131072]{0}', space=vmem, size = 0x20000, scoped, tag = 'output window, operand 0']
    %6 = vsyncpa [#allocation3], 0
    %s7 = scalar_lea.sflag [#allocation3], 1
    %8 = vsyncpa %s7, 0
    %9 = vsyncpa [#allocation4], 0
    %s10 = scalar_lea.sflag [#allocation4], 1
    %11 = vsyncpa %s10, 0
    loop: start=0, step=1, limit=4
    $region2: #{_pixel_mixer_impl.1} parent=1 // loop_pre_header
      _
    $region3: #{_pixel_mixer_impl.1} parent=1 // loop_header
      %s13 = sphi 0, %s17
      %p14 = scmp.ge.s32.totalorder %s13, 4
      %s23 = sphi 0, %s25
      %s26 = sphi 0, %s23
      %s27 = sphi 0, %s26
      %s43 = sphi 0, %s27
      %s49 = sphi 0, %s51
      %s52 = sphi 0, %s49
      %s53 = sphi 0, %s52
      %s69 = sphi 0, %s53
    $region4: #{_pixel_mixer_impl.1} parent=1 // loop_header_branch
      %16 = sbr.rel (%p14) target = $region8
    $region5: #{_pixel_mixer_impl.1} parent=1 // loop_body
      %s18 = ssub.s32 %s13, 1
      %s19 = ssub.s32 %s13, 2
      %s20 = sadd.s32 %s13, 1
      %s21 = ssub.s32 %s13, %s20
      %p22 = scmp.eq.s32.totalorder %s21, 0
      %s24 = sadd.s32 %s23, 1
      %s25 = scalar_select %p22, %s23, %s24
      %p28 = pneg %p22
      %p29 = scmp.eq.s32.totalorder %s13, 1
      %p30 = por %p28, %p29
      %p31 = scmp.ne.s32.totalorder %s23, %s26
      %p32 = scmp.eq.s32.totalorder %s13, 0
      %p33 = por %p31, %p32
      %p34 = scmp.ne.s32.totalorder %s23, %s26
      %p35 = scmp.eq.s32.totalorder %s18, 1
      %p36 = por %p34, %p35
      %p37 = scmp.ne.s32.totalorder %s26, %s27
      %p38 = scmp.eq.s32.totalorder %s18, 0
      %p39 = por %p37, %p38
      %p40 = scmp.ne.s32.totalorder %s26, %s27
      %p41 = scmp.eq.s32.totalorder %s19, 1
      %p42 = por %p40, %p41
      %p44 = scmp.ne.s32.totalorder %s27, %s43
      %p45 = scmp.eq.s32.totalorder %s19, 0
      %p46 = por %p44, %p45
      %s47 = ssub.s32 %s13, %s20
      %p48 = scmp.eq.s32.totalorder %s47, 0
      %s50 = sadd.s32 %s49, 1
      %s51 = scalar_select %p48, %s49, %s50
      %p54 = pneg %p48
      %p55 = scmp.eq.s32.totalorder %s13, 1
      %p56 = por %p54, %p55
      %p57 = scmp.ne.s32.totalorder %s49, %s52
      %p58 = scmp.eq.s32.totalorder %s13, 0
      %p59 = por %p57, %p58
      %p60 = scmp.ne.s32.totalorder %s49, %s52
      %p61 = scmp.eq.s32.totalorder %s18, 1
      %p62 = por %p60, %p61
      %p63 = scmp.ne.s32.totalorder %s52, %s53
      %p64 = scmp.eq.s32.totalorder %s18, 0
      %p65 = por %p63, %p64
      %p66 = scmp.ne.s32.totalorder %s52, %s53
      %p67 = scmp.eq.s32.totalorder %s19, 1
      %p68 = por %p66, %p67
      %p70 = scmp.ne.s32.totalorder %s53, %s69
      %p71 = scmp.eq.s32.totalorder %s19, 0
      %p72 = por %p70, %p71
      %p73 = scmp.le.s32.totalorder 1, %s13
      %p74 = scmp.lt.s32.totalorder %s13, 3
      %p75 = pnand %p73, %p74
      %p76 = pneg %p75
      // Predicated region
      $region9: #{_pixel_mixer_impl.1} parent=5 // pred_check
        _
      $region10: #{_pixel_mixer_impl.1} parent=5 // pred_check_branch
        %78 = sbr.rel (%p75) target = $region12
      $region11: #{_pixel_mixer_impl.1} parent=5 // pred_region
        %s79 = ssub.s32 %s13, 1
      $region12: #{_pixel_mixer_impl.1} parent=5 // pred_fallthru
        _
      %p80 = scmp.lt.s32.totalorder %s13, 2
      // Predicated region
      $region13: #{_pixel_mixer_impl.1} parent=5 // pred_check
        %p81 = pneg %p80
      $region14: #{_pixel_mixer_impl.1} parent=5 // pred_check_branch
        %83 = sbr.rel (%p81) target = $region16
      $region15: #{_pixel_mixer_impl.1} parent=5 // pred_region
        // Predicated region
        $region17: #{_pixel_mixer_impl.1} parent=15 // pred_check
          %p84 = pneg %p33
        $region18: #{_pixel_mixer_impl.1} parent=15 // pred_check_branch
          %86 = sbr.rel (%p84) target = $region20
        $region19: #{_pixel_mixer_impl.1} parent=15 // pred_region
          #allocation7 [shape = 'u32[6]{0}', space=smem, size = 0x18, scoped, tag = 'DMA stride descriptor']
          %s87 = sand.u32 %s23, 1
          %s88 = scalar_lea.sflag [#allocation3], %s87
          %s89 = sand.u32 %s23, 1
          %s90 = smul.addr %s89, 128
          %s91 = scalar_lea.vmem [#allocation2], %s90
          %s92 = smul.u32 2, %s13
          %s94 = ssub.s32 2048, 2048
          %95 = vsyncadd %s88, %s94
          %s96 = smul.addr %s92, 10
          %s97 = smul.addr %s96, 128
          %s98 = scalar_lea.hbm %s0, %s97
          %s100 = sshll.u32 1, 14
          %s101 = sxor.u32 4294967295, %s100
          %s103 = sld [smem:[#allocation0]]
          %s104 = sadd.s32 2, %s103
          %s106 = sshll.u32 7, 26
          %s107 = sxor.u32 4294967295, %s106
          %s108 = sand.u32 0, %s107
          %s109 = sshll.u32 %s104, 26
          %s110 = sor.u32 %s108, %s109
          %s111 = sshll.u32 %s91, 4
          %s112 = int_to_ptr.vmem [resolvable:$true] %s111
          %118 = sst [smem:[#allocation7]] 1280
          %s119 = scalar_lea.smem [#allocation7], 1
          %120 = sst [smem:[%s119]] 1024
          %s121 = scalar_lea.smem [#allocation7], 2
          %122 = sst [smem:[%s121]] 8
          %s123 = scalar_lea.smem [#allocation7], 3
          %124 = sst [smem:[%s123]] 128
          %s125 = scalar_lea.smem [#allocation7], 4
          %126 = sst [smem:[%s125]] 128
          %s127 = scalar_lea.smem [#allocation7], 5
          %128 = sst [smem:[%s127]] 8
          %130 = dma.general %s98, 2048, %s112, %s88, [#allocation6], [#allocation7], %s110, 0
        $region20: #{_pixel_mixer_impl.1} parent=15 // pred_fallthru
          _
      $region16: #{_pixel_mixer_impl.1} parent=5 // pred_fallthru
        _
      %p131 = scmp.le.s32.totalorder 1, %s13
      %p132 = scmp.lt.s32.totalorder %s13, 3
      %p133 = pnand %p131, %p132
      %p134 = pneg %p133
      // Predicated region
      $region21: #{_pixel_mixer_impl.1} parent=5 // pred_check
        _
      $region22: #{_pixel_mixer_impl.1} parent=5 // pred_check_branch
        %136 = sbr.rel (%p133) target = $region24
      $region23: #{_pixel_mixer_impl.1} parent=5 // pred_region
        %s137 = ssub.s32 %s13, 1
        %s138 = sand.u32 %s26, 1
        %s139 = scalar_lea.sflag [#allocation3], %s138
        %s140 = sand.u32 %s26, 1
        %s141 = smul.addr %s140, 128
        %s142 = scalar_lea.vmem [#allocation2], %s141
        // Predicated region
        $region25: #{_pixel_mixer_impl.1} parent=23 // pred_check
          %p143 = pneg %p39
        $region26: #{_pixel_mixer_impl.1} parent=23 // pred_check_branch
          %145 = sbr.rel (%p143) target = $region28
        $region27: #{_pixel_mixer_impl.1} parent=23 // pred_region
          %146 = dma.done %s139, 2048
        $region28: #{_pixel_mixer_impl.1} parent=23 // pred_fallthru
          _
        %s147 = sand.u32 %s26, 1
        %s148 = scalar_lea.sflag [#allocation3], %s147
        %s149 = sand.u32 %s26, 1
        %s150 = smul.addr %s149, 128
        %s151 = scalar_lea.vmem [#allocation2], %s150
        %p152 = pneg %p39
        %p153 = pneg %p36
        %p154 = pneg %p65
        %p155 = pneg %p62
        %s156 = sand.u32 %s52, 1
        %s157 = scalar_lea.sflag [#allocation4], %s156
        %s158 = sand.u32 %s52, 1
        %s159 = smul.addr %s158, 128
        %s160 = scalar_lea.vmem [#allocation5], %s159
        %s161 = smul.u32 2, %s18
        %s162 = smul.u32 2, %s18
        %v163 = vld [vmem:[%s142] sm:$0xff]
        %v164 = vld [vmem:[%s142 + $0x8] sm:$0xff]
        %v165 = vld [vmem:[%s142 + $0x40] sm:$0xff]
        %v166 = vld [vmem:[%s142 + $0x48] sm:$0xff]
        %171 = vrot.lane.b32.xlu0 %v163, 127
        %v172 = vpop.permute.xlu0 %171
        %173 = vrot.lane.b32.xlu0 %v164, 127
        %v174 = vpop.permute.xlu0 %173
        %175 = vrot.lane.b32.xlu0 %v165, 127
        %v176 = vpop.permute.xlu0 %175
        %177 = vrot.lane.b32.xlu0 %v166, 127
        %v178 = vpop.permute.xlu0 %177
        %vm183 = vcmask 1048568
        %184 = vst.msk [vmem:[%s160] sm:$0xff] %vm183, %v172
        %185 = vst.msk [vmem:[%s160 + $0x8] sm:$0xff] %vm183, %v174
        %186 = vst.msk [vmem:[%s160 + $0x40] sm:$0xff] %vm183, %v176
        %187 = vst.msk [vmem:[%s160 + $0x48] sm:$0xff] %vm183, %v178
        %v188 = vld [vmem:[%s142] sm:$0xff]
        %v189 = vld [vmem:[%s142 + $0x8] sm:$0xff]
        %v190 = vld [vmem:[%s142 + $0x40] sm:$0xff]
        %v191 = vld [vmem:[%s142 + $0x48] sm:$0xff]
        %196 = vrot.lane.b32.xlu0 %v188, 127
        %v197 = vpop.permute.xlu0 %196
        %198 = vrot.lane.b32.xlu0 %v189, 127
        %v199 = vpop.permute.xlu0 %198
        %200 = vrot.lane.b32.xlu0 %v190, 127
        %v201 = vpop.permute.xlu0 %200
        %202 = vrot.lane.b32.xlu0 %v191, 127
        %v203 = vpop.permute.xlu0 %202
        %vm208 = vcmask 1039360
        %209 = vst.msk [vmem:[%s160] sm:$0xff] %vm208, %v197
        %210 = vst.msk [vmem:[%s160 + $0x8] sm:$0xff] %vm208, %v199
        %211 = vst.msk [vmem:[%s160 + $0x40] sm:$0xff] %vm208, %v201
        %212 = vst.msk [vmem:[%s160 + $0x48] sm:$0xff] %vm208, %v203
        %s213 = scalar_lea.vmem %s142, 16 [#allocation2]
        %v214 = vld [vmem:[%s213] sm:$0xff]
        %v215 = vld [vmem:[%s213 + $0x8] sm:$0xff]
        %v216 = vld [vmem:[%s213 + $0x40] sm:$0xff]
        %v217 = vld [vmem:[%s213 + $0x48] sm:$0xff]
        %222 = vrot.lane.b32.xlu0 %v214, 1
        %v223 = vpop.permute.xlu0 %222
        %224 = vrot.lane.b32.xlu0 %v215, 1
        %v225 = vpop.permute.xlu0 %224
        %226 = vrot.lane.b32.xlu0 %v216, 1
        %v227 = vpop.permute.xlu0 %226
        %228 = vrot.lane.b32.xlu0 %v217, 1
        %v229 = vpop.permute.xlu0 %228
        %s234 = scalar_lea.vmem %s160, 16 [#allocation5]
        %vm235 = vcmask 1047560
        %236 = vst.msk [vmem:[%s234] sm:$0xff] %vm235, %v223
        %237 = vst.msk [vmem:[%s234 + $0x8] sm:$0xff] %vm235, %v225
        %238 = vst.msk [vmem:[%s234 + $0x40] sm:$0xff] %vm235, %v227
        %239 = vst.msk [vmem:[%s234 + $0x48] sm:$0xff] %vm235, %v229
        %v240 = vld [vmem:[%s213] sm:$0xff]
        %v241 = vld [vmem:[%s213 + $0x8] sm:$0xff]
        %v242 = vld [vmem:[%s213 + $0x40] sm:$0xff]
        %v243 = vld [vmem:[%s213 + $0x48] sm:$0xff]
        %248 = vrot.lane.b32.xlu0 %v240, 1
        %v249 = vpop.permute.xlu0 %248
        %250 = vrot.lane.b32.xlu0 %v241, 1
        %v251 = vpop.permute.xlu0 %250
        %252 = vrot.lane.b32.xlu0 %v242, 1
        %v253 = vpop.permute.xlu0 %252
        %254 = vrot.lane.b32.xlu0 %v243, 1
        %v255 = vpop.permute.xlu0 %254
        %vm260 = vcmask 7168
        %261 = vst.msk [vmem:[%s234] sm:$0xff] %vm260, %v249
        %262 = vst.msk [vmem:[%s234 + $0x8] sm:$0xff] %vm260, %v251
        %263 = vst.msk [vmem:[%s234 + $0x40] sm:$0xff] %vm260, %v253
        %264 = vst.msk [vmem:[%s234 + $0x48] sm:$0xff] %vm260, %v255
        %s265 = scalar_lea.vmem %s142, 32 [#allocation2]
        %v266 = vld [vmem:[%s265] sm:$0x1]
        %v267 = vld [vmem:[%s265 + $0x40] sm:$0x1]
        %s268 = scalar_lea.vmem %s160, 32 [#allocation5]
        %269 = vst [vmem:[%s268 + $0xf] sm:$0x1] %v266
        %270 = vst [vmem:[%s268 + $0x4f] sm:$0x1] %v267
        %v271 = vld [vmem:[%s265 + $0x1] sm:$0xff]
        %v272 = vld [vmem:[%s265 + $0x9] sm:$0x7f]
        %v273 = vld [vmem:[%s265 + $0x41] sm:$0xff]
        %v274 = vld [vmem:[%s265 + $0x49] sm:$0x7f]
        %275 = vst [vmem:[%s268] sm:$0xff] %v271
        %276 = vst [vmem:[%s268 + $0x8] sm:$0x7f] %v272
        %277 = vst [vmem:[%s268 + $0x40] sm:$0xff] %v273
        %278 = vst [vmem:[%s268 + $0x48] sm:$0x7f] %v274
        %s279 = scalar_lea.vmem %s142, 48 [#allocation2]
        %v280 = vld [vmem:[%s279] sm:$0xff]
        %v281 = vld [vmem:[%s279 + $0x8] sm:$0x7f]
        %v282 = vld [vmem:[%s279 + $0x40] sm:$0xff]
        %v283 = vld [vmem:[%s279 + $0x48] sm:$0x7f]
        %s284 = scalar_lea.vmem %s160, 48 [#allocation5]
        %285 = vst [vmem:[%s284 + $0x1] sm:$0xff] %v280
        %286 = vst [vmem:[%s284 + $0x9] sm:$0x7f] %v281
        %287 = vst [vmem:[%s284 + $0x41] sm:$0xff] %v282
        %288 = vst [vmem:[%s284 + $0x49] sm:$0x7f] %v283
        %v289 = vld [vmem:[%s279 + $0xf] sm:$0x1]
        %v290 = vld [vmem:[%s279 + $0x4f] sm:$0x1]
        %291 = vst [vmem:[%s284] sm:$0x1] %v289
        %292 = vst [vmem:[%s284 + $0x40] sm:$0x1] %v290
        %s293 = sand.u32 %s52, 1
        %s294 = scalar_lea.sflag [#allocation4], %s293
        %s295 = sand.u32 %s52, 1
        %s296 = smul.addr %s295, 128
        %s297 = scalar_lea.vmem [#allocation5], %s296
        // Predicated region
        $region29: #{_pixel_mixer_impl.1} parent=23 // pred_check
          %p298 = pneg %p62
        $region30: #{_pixel_mixer_impl.1} parent=23 // pred_check_branch
          %300 = sbr.rel (%p298) target = $region32
        $region31: #{_pixel_mixer_impl.1} parent=23 // pred_region
          #allocation9 [shape = 'u32[6]{0}', space=smem, size = 0x18, scoped, tag = 'DMA stride descriptor']
          %s301 = smul.u32 2, %s18
          %s303 = ssub.s32 2048, 2048
          %304 = vsyncadd %s294, %s303
          %s305 = smul.addr %s301, 10
          %s306 = smul.addr %s305, 128
          %s307 = scalar_lea.hbm %s1, %s306
          %s309 = sshll.u32 1, 14
          %s310 = sxor.u32 4294967295, %s309
          %s313 = sshll.u32 7, 18
          %s314 = sxor.u32 4294967295, %s313
          %s315 = sand.u32 0, %s314
          %s317 = sor.u32 %s315, 0
          %s319 = sshll.u32 3, 24
          %s320 = sxor.u32 4294967295, %s319
          %s321 = sand.u32 %s317, %s320
          %s323 = sor.u32 %s321, 0
          %s324 = sshll.u32 %s297, 4
          %s325 = int_to_ptr.vmem [resolvable:$true] %s324
          %331 = sst [smem:[#allocation9]] 1024
          %s332 = scalar_lea.smem [#allocation9], 1
          %333 = sst [smem:[%s332]] 1280
          %s334 = scalar_lea.smem [#allocation9], 2
          %335 = sst [smem:[%s334]] 8
          %s336 = scalar_lea.smem [#allocation9], 3
          %337 = sst [smem:[%s336]] 128
          %s338 = scalar_lea.smem [#allocation9], 4
          %339 = sst [smem:[%s338]] 128
          %s340 = scalar_lea.smem [#allocation9], 5
          %341 = sst [smem:[%s340]] 8
          %343 = dma.general %s325, 2048, %s307, %s294, [#allocation8], [#allocation9], %s323, 0
        $region32: #{_pixel_mixer_impl.1} parent=23 // pred_fallthru
          _
      $region24: #{_pixel_mixer_impl.1} parent=5 // pred_fallthru
        _
      %p344 = scmp.le.s32.totalorder 2, %s13
      // Predicated region
      $region33: #{_pixel_mixer_impl.1} parent=5 // pred_check
        %p345 = pneg %p344
      $region34: #{_pixel_mixer_impl.1} parent=5 // pred_check_branch
        %347 = sbr.rel (%p345) target = $region36
      $region35: #{_pixel_mixer_impl.1} parent=5 // pred_region
        %s348 = ssub.s32 %s13, 2
        // Predicated region
        $region37: #{_pixel_mixer_impl.1} parent=35 // pred_check
          %p349 = pneg %p68
        $region38: #{_pixel_mixer_impl.1} parent=35 // pred_check_branch
          %351 = sbr.rel (%p349) target = $region40
        $region39: #{_pixel_mixer_impl.1} parent=35 // pred_region
          %s352 = sand.u32 %s53, 1
          %s353 = scalar_lea.sflag [#allocation4], %s352
          %s354 = sand.u32 %s53, 1
          %s355 = smul.addr %s354, 128
          %s356 = scalar_lea.vmem [#allocation5], %s355
          %357 = dma.done %s353, 2048
        $region40: #{_pixel_mixer_impl.1} parent=35 // pred_fallthru
          _
      $region36: #{_pixel_mixer_impl.1} parent=5 // pred_fallthru
        _
    $region6: #{_pixel_mixer_impl.1} parent=1 // loop_footer
      %s17 = sadd.s32 1, %s13
    $region7: #{_pixel_mixer_impl.1} parent=1 // loop_footer_branch
      %12 = sbr.rel target = $region3
    $region8: #{_pixel_mixer_impl.1} parent=1 // loop_exit
      _
    %358 = vsyncpa [#allocation3], 1
    %s359 = scalar_lea.sflag [#allocation3], 1
    %360 = vsyncpa %s359, 1
    %361 = vsyncpa [#allocation4], 1
    %s362 = scalar_lea.sflag [#allocation4], 1
    %363 = vsyncpa %s362, 1

</llo_original>
